<compile_context>
chip_gen: v7x
topology: tpu7x:2x2x1
jax: 0.10.0
libtpu: 0.0.40
codegen_flags: <defaults>
</compile_context>

<pallas_src>
import functools

import jax
import jax.numpy as jnp
from jax.experimental import pallas as pl
from jax.experimental.pallas import tpu as pltpu


def _round_up(a, b):
    return (a + b - 1) // b * b


def _pick_tile(dim_pad, max_tile, quantum=128):
    """Largest multiple of `quantum` that divides dim_pad and is <= max_tile."""
    best = quantum
    t = quantum
    limit = min(max_tile, dim_pad)
    while t <= limit:
        if dim_pad % t == 0:
            best = t
        t += quantum
    return best


def _patch_embed_kernel(x_ref, w_ref, b_ref, o_ref):
    # x_ref: (TM, K_pad)  flattened-patch tile (resident across the E loop)
    # w_ref: (K_pad, TN)  projection weight tile
    # b_ref: (1, TN)      bias tile
    acc = jnp.dot(x_ref[...], w_ref[...], preferred_element_type=jnp.float32)
    o_ref[...] = (acc + b_ref[...].astype(jnp.float32)).astype(o_ref.dtype)


@functools.partial(jax.jit, static_argnames=("patch_size", "tm", "tn"))
def patch_embed(x, weight, bias, *, patch_size, tm=512, tn=512):
    """x: (B, C, H, W) NCHW.  weight: (E, C, p, p) like nn.Conv2d.  bias: (E,).

    Returns (B, num_patches, E) == PatchEmbed.forward (flatten=True, norm=Identity).
    """
    B, C, H, W = x.shape
    p = patch_size
    E = weight.shape[0]
    assert H % p == 0 and W % p == 0, "strict_img_size: H/W must be multiples of patch_size"
    Gh, Gw = H // p, W // p
    N = Gh * Gw
    K = C * p * p
    M = B * N

    # Lane-dense padded problem sizes: last dim multiples of 128, rows of 8.
    K_pad = _round_up(K, 128)
    E_pad = _round_up(E, 128)
    TN = _pick_tile(E_pad, tn, 128)          # divides E_pad exactly
    TM = min(_round_up(tm, 8), _round_up(M, 8))
    M_pad = _round_up(M, TM)

    # --- glue: extract non-overlapping patches, flatten in (c, i, j) order ---
    # (B, C, Gh, p, Gw, p) -> (B, Gh, Gw, C, p, p) -> (M, K), zero-pad to
    # (M_pad, K_pad).  allow_input_fusion lets XLA fold this into the kernel's
    # input DMA instead of a separate HBM materialization.
    patches = x.reshape(B, C, Gh, p, Gw, p).transpose(0, 2, 4, 1, 3, 5).reshape(M, K)
    patches = jnp.pad(patches, ((0, M_pad - M), (0, K_pad - K)))

    # Conv weight (E, C, p, p) -> (K, E) with the same (c, i, j) flatten order.
    w_mat = jnp.pad(weight.reshape(E, K).T, ((0, K_pad - K), (0, E_pad - E)))
    b_mat = jnp.pad(bias.reshape(1, E), ((0, 0), (0, E_pad - E)))

    grid = (M_pad // TM, E_pad // TN)  # M outer (streamed once), E inner
    out = pl.pallas_call(
        _patch_embed_kernel,
        out_shape=jax.ShapeDtypeStruct((M_pad, E_pad), x.dtype),
        grid=grid,
        in_specs=[
            pl.BlockSpec((TM, K_pad), lambda i, j: (i, 0)),  # patches tile
            pl.BlockSpec((K_pad, TN), lambda i, j: (0, j)),  # weight tile
            pl.BlockSpec((1, TN), lambda i, j: (0, j)),      # bias tile
        ],
        out_specs=pl.BlockSpec((TM, TN), lambda i, j: (i, j)),
        compiler_params=pltpu.CompilerParams(
            dimension_semantics=("parallel", "parallel"),
            allow_input_fusion=[True, False, False],
        ),
        cost_estimate=pl.CostEstimate(
            flops=2 * M * K * E,
            transcendentals=0,
            bytes_accessed=x.dtype.itemsize * (M * K + K * E + M * E)
            + bias.dtype.itemsize * E,
        ),
    )(patches, w_mat, b_mat)

    # Strip padding; reshape to (B, num_patches, embed_dim).
    return out[:M, :E].reshape(B, N, E)


if __name__ == "__main__":
    # Small config consistent with the module: img_size=16, patch_size=4,
    # in_chans=4, embed_dim=32, batch=2  ->  num_patches = 16, K = 64.
    B, C, H, W = 2, 4, 16, 16
    patch_size = 4
    embed_dim = 32

    key = jax.random.PRNGKey(0)
    kx, kw, kb = jax.random.split(key, 3)
    x = jax.random.normal(kx, (B, C, H, W), dtype=jnp.float32)
    # deterministic synthetic params (shapes match nn.Conv2d(C, E, p, stride=p))
    weight = jax.random.normal(
        kw, (embed_dim, C, patch_size, patch_size), dtype=jnp.float32) * 0.02
    bias = jax.random.normal(kb, (embed_dim,), dtype=jnp.float32) * 0.02

    out = patch_embed(x, weight, bias, patch_size=patch_size)
    out = jax.block_until_ready(out)

    # Sanity check against a plain-JAX reference of the strided conv.
    ref = jax.lax.conv_general_dilated(
        x, weight, window_strides=(patch_size, patch_size), padding="VALID",
        dimension_numbers=("NCHW", "OIHW", "NCHW"))
    ref = ref + bias[None, :, None, None]
    ref = ref.reshape(B, embed_dim, -1).transpose(0, 2, 1)  # flatten(2).transpose(1,2)

    assert out.shape == (B, (H // patch_size) * (W // patch_size), embed_dim)
    assert jnp.allclose(out, ref, atol=1e-4, rtol=1e-4)

    print("KERNEL_OK")
</pallas_src>

<mosaic_0001>
module attributes {stable_mosaic.version = 11 : i64} {
  func.func @_patch_embed_kernel(%arg0: i32, %arg1: i32, %arg2: memref<32x128xf32, #tpu.memory_space<vmem>>, %arg3: memref<128x128xf32, #tpu.memory_space<vmem>>, %arg4: memref<1x128xf32, #tpu.memory_space<vmem>>, %arg5: memref<32x128xf32, #tpu.memory_space<vmem>>) attributes {dimension_semantics = [#tpu.dimension_semantics<parallel>, #tpu.dimension_semantics<parallel>], iteration_bounds = array<i64: 1, 1>, scalar_prefetch = 0 : i64, scratch_operands = 0 : i64, tpu.core_type = #tpu.core_type<tc>, window_params = [{transform_indices = @transform_0, window_bounds = array<i64: 32, 128>}, {transform_indices = @transform_1, window_bounds = array<i64: 128, 128>}, {transform_indices = @transform_2, window_bounds = array<i64: 1, 128>}, {transform_indices = @transform_3, window_bounds = array<i64: 32, 128>}]} {
    %c0 = arith.constant 0 : index
    %c0_0 = arith.constant 0 : index
    %0 = vector.load %arg2[%c0, %c0_0] : memref<32x128xf32, #tpu.memory_space<vmem>>, vector<32x128xf32>
    %c0_1 = arith.constant 0 : index
    %c0_2 = arith.constant 0 : index
    %1 = vector.load %arg3[%c0_1, %c0_2] : memref<128x128xf32, #tpu.memory_space<vmem>>, vector<128x128xf32>
    %cst = arith.constant dense<0.000000e+00> : vector<32x128xf32>
    %2 = tpu.matmul %0, %1, %cst {dimension_numbers = #tpu.dot_dimension_numbers<[1], [0], [0], [1], [0, 0, 1, 1], [], []>} : vector<32x128xf32>, vector<128x128xf32>, vector<32x128xf32> -> vector<32x128xf32>
    %c0_3 = arith.constant 0 : index
    %c0_4 = arith.constant 0 : index
    %3 = vector.load %arg4[%c0_3, %c0_4] : memref<1x128xf32, #tpu.memory_space<vmem>>, vector<1x128xf32>
    %4 = vector.broadcast %3 : vector<1x128xf32> to vector<32x128xf32>
    %5 = arith.addf %2, %4 : vector<32x128xf32>
    %c0_5 = arith.constant 0 : index
    %c0_6 = arith.constant 0 : index
    %6 = vector.load %arg5[%c0_5, %c0_6] : memref<32x128xf32, #tpu.memory_space<vmem>>, vector<32x128xf32>
    tpu.vector_store %arg5[%c0_5, %c0_6], %5 {strides = array<i32>} : memref<32x128xf32, #tpu.memory_space<vmem>>, vector<32x128xf32>,
    return
  }
  func.func @transform_0(%arg0: i32, %arg1: i32) -> (i32, i32) {
    %c0_i32 = arith.constant 0 : i32
    %c0_i32_0 = arith.constant 0 : i32
    return %arg0, %c0_i32 : i32, i32
  }
  func.func @transform_1(%arg0: i32, %arg1: i32) -> (i32, i32) {
    %c0_i32 = arith.constant 0 : i32
    %c0_i32_0 = arith.constant 0 : i32
    return %c0_i32, %arg1 : i32, i32
  }
  func.func @transform_2(%arg0: i32, %arg1: i32) -> (i32, i32) {
    %c0_i32 = arith.constant 0 : i32
    %c0_i32_0 = arith.constant 0 : i32
    return %c0_i32, %arg1 : i32, i32
  }
  func.func @transform_3(%arg0: i32, %arg1: i32) -> (i32, i32) {
    %c0_i32 = arith.constant 0 : i32
    return %arg0, %arg1 : i32, i32
  }
}

</mosaic_0001>

<llo_original>
// kernel: patch_embed.2
$region0: #{patch_embed.2}
  #allocation0 [shape = 'u32[]', space=smem, size = 0x4, offset = 0x4, fixed_abs, tag = 'smem constant byte address 0x4 - core index']
  #allocation1 [shape = 'u32[144,128]{1,0:T(1,128)}', space=vmem, size = 0x12000, scoped, tag = 'internal scratch']
  #allocation2 [shape = 'u32[2048]{0}', space=vmem, size = 0x2000, scoped, tag = 'scoped memory for patch_embed.2']
  #allocation3 [shape = 'u32[2048]{0}', space=vmem, size = 0x2000, scoped, tag = 'scoped memory for patch_embed.2']
  #allocation4 [shape = 'u32[2048]{0}', space=vmem, size = 0x2000, scoped, tag = 'scoped memory for patch_embed.2']
  #allocation5 [shape = 'u32[2048]{0}', space=vmem, size = 0x2000, scoped, tag = 'scoped memory for patch_embed.2']
  #allocation6 [shape = 'u32[2048]{0}', space=vmem, size = 0x2000, scoped, tag = 'scoped memory for patch_embed.2']
  %s0 = inlined_call_operand.vmem [shape: f32[128,128], index: 0, kind: input, shape index: {}]
  %s1 = inlined_call_operand.vmem [shape: f32[1,128], index: 1, kind: input, shape index: {}]
  %s2 = inlined_call_operand.vmem [shape: f32[32,64], index: 2, kind: input, shape index: {}]
  %s3 = inlined_call_operand.<no memory space> [shape: f32[], index: 3, kind: input, shape index: {}]
  %s4 = inlined_call_operand.hbm [shape: f32[32,128], index: 4, kind: output, shape index: {}]
  %s5 = sld [smem:[#allocation0]]
  $region22: #{patch_embed.2} parent=0
    _
  %s7 = ssub.s32 1, %s5
  %s8 = scalar_select 0, %s7, %s5
  %v9 = vstv %s3
  $region1: #{patch_embed.2} parent=0
    #allocation7 [shape = 'u8[16384]{0}', space=vmem, size = 0x4000, scoped, tag = 'output window, operand 0, single buffered']
    #allocation8 [shape = 's32[1]{0}', space=sflag, size = 0x4, scoped, tag = 'scoped memory for patch_embed.2']
    #allocation9 [shape = 'u8[16384]{0}', space=vmem, size = 0x4000, dematerialized = true, scoped, tag = 'FusionAdapter Buffer %fusion.1 = f32[32,128]{1,0:T(8,128)} fusion(%param_2.1, %param_3), kind=kLoop, calls=%fused_computation.2.clone, metadata={op_name="jit(patch_embed)/jit(_pad)/pad" stack_frame_id=8}']
    %10 = vsyncpa [#allocation8], 0
    // Predicated region
    $region2: #{patch_embed.2} parent=1 // pred_check
      _
    $region3: #{patch_embed.2} parent=1 // pred_check_branch
      %12 = sbr.rel (0) target = $region5
    $region4: #{patch_embed.2} parent=1 // pred_region
      _
    $region5: #{patch_embed.2} parent=1 // pred_fallthru
      _
    // Predicated region
    $region6: #{patch_embed.2} parent=1 // pred_check
      _
    $region7: #{patch_embed.2} parent=1 // pred_check_branch
      %14 = sbr.rel (0) target = $region9
    $region8: #{patch_embed.2} parent=1 // pred_region
      _
    $region9: #{patch_embed.2} parent=1 // pred_fallthru
      _
    // Predicated region
    $region10: #{patch_embed.2} parent=1 // pred_check
      _
    $region11: #{patch_embed.2} parent=1 // pred_check_branch
      %16 = sbr.rel (0) target = $region13
    $region12: #{patch_embed.2} parent=1 // pred_region
      _
    $region13: #{patch_embed.2} parent=1 // pred_fallthru
      _
    %v17 = vld [vmem:[%s2] sm:$0xff]
    %v18 = vlaneseq
    %v19 = vand.u32 %v18, 127
    %vm21 = vcmp.lt.s32.totalorder %v19, 64
    %v22 = vsel %vm21, %v17, %v9
    %24 = vst [vmem:[#allocation9] sm:$0xff] %v22
    %s25 = scalar_lea.vmem %s2, 8
    %v26 = vld [vmem:[%s25] sm:$0xff]
    %v27 = vlaneseq
    %v28 = vand.u32 %v27, 127
    %vm30 = vcmp.lt.s32.totalorder %v28, 64
    %v31 = vsel %vm30, %v26, %v9
    %s32 = scalar_lea.vmem [#allocation9], 8
    %34 = vst [vmem:[%s32] sm:$0xff] %v31
    %s35 = scalar_lea.vmem %s2, 16
    %v36 = vld [vmem:[%s35] sm:$0xff]
    %v37 = vlaneseq
    %v38 = vand.u32 %v37, 127
    %vm40 = vcmp.lt.s32.totalorder %v38, 64
    %v41 = vsel %vm40, %v36, %v9
    %s42 = scalar_lea.vmem [#allocation9], 16
    %44 = vst [vmem:[%s42] sm:$0xff] %v41
    %s45 = scalar_lea.vmem %s2, 24
    %v46 = vld [vmem:[%s45] sm:$0xff]
    %v47 = vlaneseq
    %v48 = vand.u32 %v47, 127
    %vm50 = vcmp.lt.s32.totalorder %v48, 64
    %v51 = vsel %vm50, %v46, %v9
    %s52 = scalar_lea.vmem [#allocation9], 24
    %54 = vst [vmem:[%s52] sm:$0xff] %v51
    %v55 = vld [vmem:[#allocation9] sm:$0xff]
    %v56 = vld [vmem:[#allocation9 + $0x8] sm:$0xff]
    %v57 = vld [vmem:[#allocation9 + $0x10] sm:$0xff]
    %v58 = vld [vmem:[#allocation9 + $0x18] sm:$0xff]
    %v59 = vld [vmem:[%s0] sm:$0xff]
    %v60 = vld [vmem:[%s0 + $0x8] sm:$0xff]
    %v61 = vld [vmem:[%s0 + $0x10] sm:$0xff]
    %v62 = vld [vmem:[%s0 + $0x18] sm:$0xff]
    %v63 = vld [vmem:[%s0 + $0x20] sm:$0xff]
    %v64 = vld [vmem:[%s0 + $0x28] sm:$0xff]
    %v65 = vld [vmem:[%s0 + $0x30] sm:$0xff]
    %v66 = vld [vmem:[%s0 + $0x38] sm:$0xff]
    %v67 = vld [vmem:[%s0 + $0x40] sm:$0xff]
    %v68 = vld [vmem:[%s0 + $0x48] sm:$0xff]
    %v69 = vld [vmem:[%s0 + $0x50] sm:$0xff]
    %v70 = vld [vmem:[%s0 + $0x58] sm:$0xff]
    %v71 = vld [vmem:[%s0 + $0x60] sm:$0xff]
    %v72 = vld [vmem:[%s0 + $0x68] sm:$0xff]
    %v73 = vld [vmem:[%s0 + $0x70] sm:$0xff]
    %v74 = vld [vmem:[%s0 + $0x78] sm:$0xff]
    %v75 = vld [vmem:[%s1] sm:$0x1]
    %v77 = vlaneseq
    %v78 = vshrl.u32 %v77, 7
    %v79 = vsub.s32 0, %v78
    %v80 = vrot.slane %v75, %v79
    %82 = vmatprep.subr.mxu0 0.0
    %83 = vmatpush1.msra.mxu0 %v59
    %84 = vmatprep.subr.mxu0 0.0
    %85 = vmatpush1.msra.mxu0 %v60
    %86 = vmatprep.subr.mxu0 0.0
    %87 = vmatpush1.msra.mxu0 %v61
    %88 = vmatprep.subr.mxu0 0.0
    %89 = vmatpush1.msra.mxu0 %v62
    %90 = vmatprep.subr.mxu0 0.0
    %91 = vmatpush1.msra.mxu0 %v63
    %92 = vmatprep.subr.mxu0 0.0
    %93 = vmatpush1.msra.mxu0 %v64
    %94 = vmatprep.subr.mxu0 0.0
    %95 = vmatpush1.msra.mxu0 %v65
    %96 = vmatprep.subr.mxu0 0.0
    %97 = vmatpush1.msra.mxu0 %v66
    %98 = vmatprep.subr.mxu0 0.0
    %99 = vmatpush1.msra.mxu0 %v67
    %100 = vmatprep.subr.mxu0 0.0
    %101 = vmatpush1.msra.mxu0 %v68
    %102 = vmatprep.subr.mxu0 0.0
    %103 = vmatpush1.msra.mxu0 %v69
    %104 = vmatprep.subr.mxu0 0.0
    %105 = vmatpush1.msra.mxu0 %v70
    %106 = vmatprep.subr.mxu0 0.0
    %107 = vmatpush1.msra.mxu0 %v71
    %108 = vmatprep.subr.mxu0 0.0
    %109 = vmatpush1.msra.mxu0 %v72
    %110 = vmatprep.subr.mxu0 0.0
    %111 = vmatpush1.msra.mxu0 %v73
    %112 = vmatprep.subr.mxu0 0.0
    %113 = vmatpush1.msra.mxu0 %v74
    %114 = vmatprep.subr.mxu0 0.0
    %115 = vmatpush1.msra.mxu0 0.0
    %116 = vmatprep.subr.mxu0 0.0
    %117 = vmatpush1.msra.mxu0 0.0
    %118 = vmatprep.subr.mxu0 0.0
    %119 = vmatpush1.msra.mxu0 0.0
    %120 = vmatprep.subr.mxu0 0.0
    %121 = vmatpush1.msra.mxu0 0.0
    %122 = vmatprep.subr.mxu0 0.0
    %123 = vmatpush1.msra.mxu0 0.0
    %124 = vmatprep.subr.mxu0 0.0
    %125 = vmatpush1.msra.mxu0 0.0
    %126 = vmatprep.subr.mxu0 0.0
    %127 = vmatpush1.msra.mxu0 0.0
    %128 = vmatprep.subr.mxu0 0.0
    %129 = vmatpush1.msra.mxu0 0.0
    %130 = vmatprep.subr.mxu0 0.0
    %131 = vmatpush1.msra.mxu0 0.0
    %132 = vmatprep.subr.mxu0 0.0
    %133 = vmatpush1.msra.mxu0 0.0
    %134 = vmatprep.subr.mxu0 0.0
    %135 = vmatpush1.msra.mxu0 0.0
    %136 = vmatprep.subr.mxu0 0.0
    %137 = vmatpush1.msra.mxu0 0.0
    %138 = vmatprep.subr.mxu0 0.0
    %139 = vmatpush1.msra.mxu0 0.0
    %140 = vmatprep.subr.mxu0 0.0
    %141 = vmatpush1.msra.mxu0 0.0
    %142 = vmatprep.subr.mxu0 0.0
    %143 = vmatpush1.msra.mxu0 0.0
    %144 = vmatprep.subr.mxu0 0.0
    %145 = vmatpush1.msra.mxu0 0.0
    %146 = vmatprep.mubr.f32.mxu0 0.0
    %147 = vmatmul.mubr.f32.gmra.mrb[0].mxu0 %v55
    %v148 = vpop.f32.mrb[0].mxu0
    %v149 = vadd.f32 %v80, %v148
    %v150 = vpop.f32.mrb[0].mxu0
    %151 = vmatprep.mubr.f32.mxu0 0.0
    %152 = vmatmul.mubr.f32.gmra.mrb[0].mxu0 %v56
    %v153 = vpop.f32.mrb[0].mxu0
    %v154 = vadd.f32 %v80, %v153
    %v155 = vpop.f32.mrb[0].mxu0
    %156 = vmatprep.mubr.f32.mxu0 0.0
    %157 = vmatmul.mubr.f32.gmra.mrb[0].mxu0 %v57
    %v158 = vpop.f32.mrb[0].mxu0
    %v159 = vadd.f32 %v80, %v158
    %v160 = vpop.f32.mrb[0].mxu0
    %161 = vmatprep.mubr.f32.mxu0 0.0
    %162 = vmatmul.mubr.f32.gmra.mrb[0].mxu0 %v58
    %v163 = vpop.f32.mrb[0].mxu0
    %v164 = vadd.f32 %v80, %v163
    %v165 = vpop.f32.mrb[0].mxu0
    %166 = vdwg.mxu0
    %167 = vst [vmem:[#allocation7] sm:$0xff] %v149
    %168 = vst [vmem:[#allocation7 + $0x8] sm:$0xff] %v154
    %169 = vst [vmem:[#allocation7 + $0x10] sm:$0xff] %v159
    %170 = vst [vmem:[#allocation7 + $0x18] sm:$0xff] %v164
    // Predicated region
    $region14: #{patch_embed.2} parent=1 // pred_check
      _
    $region15: #{patch_embed.2} parent=1 // pred_check_branch
      %172 = sbr.rel (0) target = $region17
    $region16: #{patch_embed.2} parent=1 // pred_region
      %s174 = ssub.s32 512, 512
      %175 = vsyncadd [#allocation8], %s174
      %s176 = sshll.u32 [#allocation7], 4
      %s177 = int_to_ptr.vmem [resolvable:$true] %s176
      %182 = dma.vmem_to_hbm [thread:$0]  %s177, 512, %s4, [#allocation8], 128, 128, 8
    $region17: #{patch_embed.2} parent=1 // pred_fallthru
      _
    // Predicated region
    $region18: #{patch_embed.2} parent=1 // pred_check
      _
    $region19: #{patch_embed.2} parent=1 // pred_check_branch
      %184 = sbr.rel (0) target = $region21
    $region20: #{patch_embed.2} parent=1 // pred_region
      %185 = dma.done [#allocation8], 512
    $region21: #{patch_embed.2} parent=1 // pred_fallthru
      _
    %186 = vsyncpa [#allocation8], 1

</llo_original>
